<compile_context>
chip_gen: v5e
topology: v5e:2x2
jax: 0.10.0
libtpu: 0.0.40
codegen_flags: <defaults>
</compile_context>

<pallas_src>
import functools

import jax
import jax.numpy as jnp
from jax.experimental import pallas as pl
from jax.experimental.pallas import tpu as pltpu

SMOOTH = 0.0001


def _round_up(a, b):
    return (a + b - 1) // b * b


def _focal_loss_kernel(*refs, apply_alpha, gamma, l_true, tile_l):
    """One grid step = one (C, TL) lane-dense slab of logits for one image.

    Softmax is taken over the class (sublane) axis; the target class is
    selected with a one-hot compare; the tile's loss sum is accumulated in
    the resident per-image (1, 1) output block.
    """
    if apply_alpha:
        logit_ref, target_ref, alpha_ref, out_ref = refs
    else:
        logit_ref, target_ref, out_ref = refs
        alpha_ref = None

    lt = pl.program_id(1)

    @pl.when(lt == 0)
    def _():
        out_ref[...] = jnp.zeros_like(out_ref)

    x = logit_ref[...].astype(jnp.float32)          # (C, TL)
    t = target_ref[...]                             # (1, TL) int32

    # Row-stable softmax over the class axis without materializing p:
    #   pt = exp(x_t - m) / sum_c exp(x_c - m) + smooth
    m = jnp.max(x, axis=0, keepdims=True)           # (1, TL)
    e = jnp.exp(x - m)                              # (C, TL)
    s = jnp.sum(e, axis=0, keepdims=True)           # (1, TL)

    # Select e[target] via a one-hot compare (no dynamic gather on TPU).
    cls_idx = jax.lax.broadcasted_iota(jnp.int32, x.shape, 0)        # (C, TL)
    onehot = cls_idx == t                                            # (C, TL)
    e_t = jnp.sum(jnp.where(onehot, e, 0.0), axis=0, keepdims=True)  # (1, TL)

    pt = e_t / s + SMOOTH                           # (1, TL)
    logpt = jnp.log(pt)
    q = 1.0 - pt
    if gamma == 2.0:
        focal = q * q                               # exact, no pow/NaN hazard
    else:
        focal = jnp.power(q, gamma)
    loss = -(focal * logpt)                         # (1, TL)

    if apply_alpha:
        alpha_t = jnp.sum(jnp.where(onehot, alpha_ref[...], 0.0),
                          axis=0, keepdims=True)    # (1, TL)
        loss = loss * alpha_t

    # Zero out padded columns (L was padded up to a multiple of tile_l).
    col = jax.lax.broadcasted_iota(jnp.int32, loss.shape, 1)         # (1, TL)
    valid = (lt * tile_l + col) < l_true
    loss = jnp.where(valid, loss, 0.0)

    out_ref[...] = out_ref[...] + jnp.sum(loss)


def focal_loss_ori(logit, target, alpha=None, *, gamma=2.0, tile_l=None):
    """Pallas implementation of FocalLoss_Ori.forward (mean reduction).

    Args:
      logit:  (N, C, *spatial) float logits (e.g. NCHW), f32 or bf16.
      target: (N, *spatial) integer class labels.
      alpha:  optional (C,) class-balance factors; None -> ones (skipped).
      gamma:  focusing parameter (default 2 -> exact squaring).
      tile_l: optional lane tile override (multiple of 128).
    Returns:
      scalar float32 loss (mean over all N * prod(spatial) elements).
    """
    N, C = logit.shape[:2]
    L = 1
    for d in logit.shape[2:]:
        L *= d
    if L == 0:
        raise ValueError("empty spatial extent")

    # Free reshapes only (no HBM transpose pass).
    logit_3d = jnp.reshape(logit, (N, C, L))
    target_2d = jnp.reshape(target, (N, L)).astype(jnp.int32)

    # Lane-dense tile along L: multiple of 128, ~1 MiB of logits per block.
    if tile_l is None:
        itemsize = jnp.dtype(logit.dtype).itemsize
        target_block_bytes = 1 << 20
        cap = max(128, (target_block_bytes // (C * itemsize)) // 128 * 128)
        tile_l = min(cap, _round_up(L, 128))
    assert tile_l % 128 == 0, "tile_l must be a multiple of 128"

    l_pad = _round_up(L, tile_l)
    if l_pad != L:
        # Padded columns get logits=0 / target=0 and are masked out in-kernel.
        logit_3d = jnp.pad(logit_3d, ((0, 0), (0, 0), (0, l_pad - L)))
        target_2d = jnp.pad(target_2d, ((0, 0), (0, l_pad - L)))
    target_3d = target_2d.reshape(N, 1, l_pad)
    num_l_tiles = l_pad // tile_l

    apply_alpha = alpha is not None
    operands = [logit_3d, target_3d]
    in_specs = [
        # Leading batch dim squeezed out of the kernel view (None).
        pl.BlockSpec((None, C, tile_l), lambda n, l: (n, 0, l)),   # logits
        pl.BlockSpec((None, 1, tile_l), lambda n, l: (n, 0, l)),   # targets
    ]
    if apply_alpha:
        alpha_3d = jnp.asarray(alpha, jnp.float32).reshape(1, C, 1)
        operands.append(alpha_3d)
        in_specs.append(pl.BlockSpec((None, C, 1), lambda n, l: (0, 0, 0)))

    kernel = functools.partial(
        _focal_loss_kernel,
        apply_alpha=apply_alpha,
        gamma=float(gamma),
        l_true=L,
        tile_l=tile_l,
    )

    # Per-image partial sums; resident output block across the L axis.
    partial_sums = pl.pallas_call(
        kernel,
        out_shape=jax.ShapeDtypeStruct((N, 1, 1), jnp.float32),
        grid_spec=pltpu.PrefetchScalarGridSpec(
            num_scalar_prefetch=0,
            grid=(N, num_l_tiles),
            in_specs=in_specs,
            out_specs=pl.BlockSpec((None, 1, 1), lambda n, l: (n, 0, 0)),
        ),
        compiler_params=pltpu.CompilerParams(
            dimension_semantics=("parallel", "arbitrary"),
        ),
    )(*operands)

    return jnp.sum(partial_sums) / jnp.float32(N * L)


def _reference_focal_loss(logit, target, alpha=None, gamma=2.0):
    """Pure-JAX reference mirroring the PyTorch forward (mean reduction)."""
    N, C = logit.shape[:2]
    prob = jax.nn.softmax(logit.astype(jnp.float32), axis=1)
    prob = jnp.moveaxis(prob.reshape(N, C, -1), 1, 2).reshape(-1, C)
    t = target.reshape(-1)
    pt = jnp.take_along_axis(prob, t[:, None], axis=1)[:, 0] + SMOOTH
    logpt = jnp.log(pt)
    if alpha is None:
        alpha = jnp.ones((C,), jnp.float32)
    alpha_t = jnp.asarray(alpha, jnp.float32)[t]
    loss = -alpha_t * (1.0 - pt) ** gamma * logpt
    return jnp.mean(loss)


if __name__ == "__main__":
    key = jax.random.PRNGKey(0)
    k1, k2, k3 = jax.random.split(key, 3)

    N, C, H, W = 2, 4, 16, 16          # small NCHW example
    logit = jax.random.normal(k1, (N, C, H, W), dtype=jnp.float32)
    target = jax.random.randint(k2, (N, H, W), 0, C, dtype=jnp.int32)

    # Module defaults: alpha=None (-> ones, gather skipped), gamma=2, 'mean'.
    loss = jax.block_until_ready(focal_loss_ori(logit, target))
    ref = jax.block_until_ready(_reference_focal_loss(logit, target))
    assert jnp.allclose(loss, ref, rtol=1e-5, atol=1e-6), (loss, ref)

    # Explicit non-uniform alpha path (module's list/ndarray alpha case).
    alpha = jax.random.uniform(k3, (C,), dtype=jnp.float32,
                               minval=0.25, maxval=1.0)
    loss_a = jax.block_until_ready(focal_loss_ori(logit, target, alpha))
    ref_a = jax.block_until_ready(_reference_focal_loss(logit, target, alpha))
    assert jnp.allclose(loss_a, ref_a, rtol=1e-5, atol=1e-6), (loss_a, ref_a)

    print("KERNEL_OK")
</pallas_src>

<mosaic_0001>
module attributes {stable_mosaic.version = 11 : i64} {
  func.func @_focal_loss_kernel(%arg0: i32, %arg1: i32, %arg2: memref<1x4x256xf32, #tpu.memory_space<vmem>>, %arg3: memref<1x1x256xi32, #tpu.memory_space<vmem>>, %arg4: memref<1x1x1xf32, #tpu.memory_space<vmem>>) attributes {dimension_semantics = [#tpu.dimension_semantics<parallel>, #tpu.dimension_semantics<arbitrary>], iteration_bounds = array<i64: 2, 1>, scalar_prefetch = 0 : i64, scratch_operands = 0 : i64, tpu.core_type = #tpu.core_type<tc>, window_params = [{transform_indices = @transform_0, window_bounds = array<i64: 1, 4, 256>}, {transform_indices = @transform_1, window_bounds = array<i64: 1, 1, 256>}, {transform_indices = @transform_2, window_bounds = array<i64: 1, 1, 1>}]} {
    %c0_i32 = arith.constant 0 : i32
    %0 = arith.cmpi eq, %arg1, %c0_i32 : i32
    %1 = arith.extui %0 : i1 to i32
    %c0_i32_0 = arith.constant 0 : i32
    %2 = arith.cmpi ne, %1, %c0_i32_0 : i32
    scf.if %2 {
      %cst_21 = arith.constant 0.000000e+00 : f32
      %50 = vector.broadcast %cst_21 : f32 to vector<1x1xf32>
      %c0_22 = arith.constant 0 : index
      %c0_23 = arith.constant 0 : index
      %c0_24 = arith.constant 0 : index
      %51 = vector.load %arg4[%c0_22, %c0_23, %c0_24] : memref<1x1x1xf32, #tpu.memory_space<vmem>>, vector<1x1x1xf32>
      %52 = vector.shape_cast %51 : vector<1x1x1xf32> to vector<1x1xf32>
      %53 = vector.shape_cast %50 : vector<1x1xf32> to vector<1x1x1xf32>
      tpu.vector_store %arg4[%c0_22, %c0_23, %c0_24], %53 {strides = array<i32>} : memref<1x1x1xf32, #tpu.memory_space<vmem>>, vector<1x1x1xf32>,
    } else {
    }
    %c0 = arith.constant 0 : index
    %c0_1 = arith.constant 0 : index
    %c0_2 = arith.constant 0 : index
    %3 = vector.load %arg2[%c0, %c0_1, %c0_2] : memref<1x4x256xf32, #tpu.memory_space<vmem>>, vector<1x4x256xf32>
    %4 = vector.shape_cast %3 : vector<1x4x256xf32> to vector<4x256xf32>
    %c0_3 = arith.constant 0 : index
    %c0_4 = arith.constant 0 : index
    %c0_5 = arith.constant 0 : index
    %5 = vector.load %arg3[%c0_3, %c0_4, %c0_5] : memref<1x1x256xi32, #tpu.memory_space<vmem>>, vector<1x1x256xi32>
    %6 = vector.shape_cast %5 : vector<1x1x256xi32> to vector<1x256xi32>
    %cst = arith.constant dense<0xFF800000> : vector<256xf32>
    %7 = vector.multi_reduction <maximumf>, %4, %cst [0] : vector<4x256xf32> to vector<256xf32>
    %8 = vector.shape_cast %7 : vector<256xf32> to vector<1x256xf32>
    %9 = vector.broadcast %8 : vector<1x256xf32> to vector<4x256xf32>
    %10 = arith.subf %4, %9 : vector<4x256xf32>
    %11 = math.exp %10 : vector<4x256xf32>
    %cst_6 = arith.constant dense<0.000000e+00> : vector<256xf32>
    %12 = vector.multi_reduction <add>, %11, %cst_6 [0] : vector<4x256xf32> to vector<256xf32>
    %13 = vector.shape_cast %12 : vector<256xf32> to vector<1x256xf32>
    %14 = tpu.iota {dimensions = array<i32: 0>} : vector<4x256xi32>
    %15 = vector.broadcast %6 : vector<1x256xi32> to vector<4x256xi32>
    %16 = arith.cmpi eq, %14, %15 : vector<4x256xi32>
    %cst_7 = arith.constant 0.000000e+00 : f32
    %17 = vector.broadcast %cst_7 : f32 to vector<4x256xf32>
    %18 = arith.select %16, %11, %17 : vector<4x256xi1>, vector<4x256xf32>
    %cst_8 = arith.constant dense<0.000000e+00> : vector<256xf32>
    %19 = vector.multi_reduction <add>, %18, %cst_8 [0] : vector<4x256xf32> to vector<256xf32>
    %20 = vector.shape_cast %19 : vector<256xf32> to vector<1x256xf32>
    %21 = arith.divf %20, %13 : vector<1x256xf32>
    %cst_9 = arith.constant 9.99999974E-5 : f32
    %22 = vector.broadcast %cst_9 : f32 to vector<1x256xf32>
    %23 = arith.addf %21, %22 : vector<1x256xf32>
    %24 = math.log %23 : vector<1x256xf32>
    %cst_10 = arith.constant 1.000000e+00 : f32
    %25 = vector.broadcast %cst_10 : f32 to vector<1x256xf32>
    %26 = arith.subf %25, %23 : vector<1x256xf32>
    %27 = arith.mulf %26, %26 : vector<1x256xf32>
    %28 = arith.mulf %27, %24 : vector<1x256xf32>
    %cst_11 = arith.constant 0.000000e+00 : f32
    %29 = vector.broadcast %cst_11 : f32 to vector<1x256xf32>
    %30 = arith.subf %29, %28 : vector<1x256xf32>
    %31 = tpu.iota {dimensions = array<i32: 1>} : vector<1x256xi32>
    %c256_i32 = arith.constant 256 : i32
    %32 = arith.muli %arg1, %c256_i32 : i32
    %33 = vector.broadcast %32 : i32 to vector<1x256xi32>
    %34 = arith.addi %33, %31 : vector<1x256xi32>
    %c256_i32_12 = arith.constant 256 : i32
    %35 = vector.broadcast %c256_i32_12 : i32 to vector<1x256xi32>
    %36 = arith.cmpi slt, %34, %35 : vector<1x256xi32>
    %cst_13 = arith.constant 0.000000e+00 : f32
    %37 = vector.broadcast %cst_13 : f32 to vector<1x256xf32>
    %38 = arith.select %36, %30, %37 : vector<1x256xi1>, vector<1x256xf32>
    %c0_14 = arith.constant 0 : index
    %c0_15 = arith.constant 0 : index
    %c0_16 = arith.constant 0 : index
    %39 = vector.load %arg4[%c0_14, %c0_15, %c0_16] : memref<1x1x1xf32, #tpu.memory_space<vmem>>, vector<1x1x1xf32>
    %40 = vector.shape_cast %39 : vector<1x1x1xf32> to vector<1x1xf32>
    %41 = vector.shape_cast %38 : vector<1x256xf32> to vector<1x1x256xf32>
    %cst_17 = arith.constant dense<0.000000e+00> : vector<1xf32>
    %42 = vector.multi_reduction <add>, %41, %cst_17 [1, 2] : vector<1x1x256xf32> to vector<1xf32>
    %43 = vector.shape_cast %42 : vector<1xf32> to vector<1x1x1xf32>
    %44 = vector.extract %43[0, 0, 0] : f32 from vector<1x1x1xf32>
    %45 = vector.broadcast %44 : f32 to vector<1x1xf32>
    %46 = arith.addf %40, %45 : vector<1x1xf32>
    %c0_18 = arith.constant 0 : index
    %c0_19 = arith.constant 0 : index
    %c0_20 = arith.constant 0 : index
    %47 = vector.load %arg4[%c0_18, %c0_19, %c0_20] : memref<1x1x1xf32, #tpu.memory_space<vmem>>, vector<1x1x1xf32>
    %48 = vector.shape_cast %47 : vector<1x1x1xf32> to vector<1x1xf32>
    %49 = vector.shape_cast %46 : vector<1x1xf32> to vector<1x1x1xf32>
    tpu.vector_store %arg4[%c0_18, %c0_19, %c0_20], %49 {strides = array<i32>} : memref<1x1x1xf32, #tpu.memory_space<vmem>>, vector<1x1x1xf32>,
    return
  }
  func.func @transform_0(%arg0: i32, %arg1: i32) -> (i32, i32, i32) {
    %c0_i32 = arith.constant 0 : i32
    %c0_i32_0 = arith.constant 0 : i32
    return %arg0, %c0_i32, %arg1 : i32, i32, i32
  }
  func.func @transform_1(%arg0: i32, %arg1: i32) -> (i32, i32, i32) {
    %c0_i32 = arith.constant 0 : i32
    %c0_i32_0 = arith.constant 0 : i32
    return %arg0, %c0_i32, %arg1 : i32, i32, i32
  }
  func.func @transform_2(%arg0: i32, %arg1: i32) -> (i32, i32, i32) {
    %c0_i32 = arith.constant 0 : i32
    %c0_i32_0 = arith.constant 0 : i32
    %c0_i32_1 = arith.constant 0 : i32
    return %arg0, %c0_i32, %c0_i32_0 : i32, i32, i32
  }
}

</mosaic_0001>

<llo_original>
// kernel: tpu_custom_call.1
$region0: #{tpu_custom_call.1}
  #allocation0 [shape = 'u32[]', space=smem, size = 0x4, offset = 0x4, fixed_abs, tag = 'smem constant byte address 0x4 - core index']
  #allocation1 [shape = 'u32[72,128]{1,0:T(1,128)}', space=vmem, size = 0x9000, scoped, tag = 'internal scratch']
  %s0 = inlined_call_operand.hbm [shape: f32[2,4,256], index: 0, kind: input, shape index: {}]
  %s1 = inlined_call_operand.hbm [shape: s32[2,1,256], index: 1, kind: input, shape index: {}]
  %s2 = inlined_call_operand.vmem [shape: f32[2,1,1], index: 2, kind: output, shape index: {}]
  %s3 = sld [smem:[#allocation0]]
  $region53: #{tpu_custom_call.1} parent=0
    _
  %s5 = ssub.s32 1, %s3
  %s6 = scalar_select 0, %s5, %s3
  $region1: #{tpu_custom_call.1} parent=0
    #allocation2 [shape = 'u8[8192]{0}', space=vmem, size = 0x2000, scoped, tag = 'input window, operand 0']
    #allocation3 [shape = 's32[2]{0}', space=sflag, size = 0x8, scoped, tag = 'scoped memory for tpu_custom_call.1']
    #allocation4 [shape = 'u8[2048]{0}', space=vmem, size = 0x800, scoped, tag = 'input window, operand 1']
    #allocation5 [shape = 's32[2]{0}', space=sflag, size = 0x8, scoped, tag = 'scoped memory for tpu_custom_call.1']
    %7 = vsyncpa [#allocation3], 0
    %s8 = scalar_lea.sflag [#allocation3], 1
    %9 = vsyncpa %s8, 0
    %10 = vsyncpa [#allocation5], 0
    %s11 = scalar_lea.sflag [#allocation5], 1
    %12 = vsyncpa %s11, 0
    loop: start=0, step=1, limit=4
    $region2: #{tpu_custom_call.1} parent=1 // loop_pre_header
      _
    $region3: #{tpu_custom_call.1} parent=1 // loop_header
      %s14 = sphi 0, %s18
      %p15 = scmp.ge.s32.totalorder %s14, 4
      %s21 = sphi 0, %s33
      %s22 = sphi 0, %s29
      %s23 = sphi 0, %s21
      %s24 = sphi 0, %s22
      %s25 = sphi 0, %s23
      %s26 = sphi 0, %s24
      %s38 = sphi 0, %s40
      %s41 = sphi 0, %s38
      %s42 = sphi 0, %s41
      %s58 = sphi 0, %s42
      %s66 = sphi 0, %s68
      %s69 = sphi 0, %s66
      %s70 = sphi 0, %s69
      %s86 = sphi 0, %s70
      %s92 = sphi 0, %s94
      %s95 = sphi 0, %s92
      %s96 = sphi 0, %s95
      %s112 = sphi 0, %s96
    $region4: #{tpu_custom_call.1} parent=1 // loop_header_branch
      %17 = sbr.rel (%p15) target = $region8
    $region5: #{tpu_custom_call.1} parent=1 // loop_body
      %s19 = ssub.s32 %s14, 1
      %s20 = ssub.s32 %s14, 2
      %s27 = sadd.s32 1, %s22
      %p28 = scmp.ge.s32.totalorder %s27, 1
      %s29 = scalar_select %p28, 0, %s27
      %s30 = sadd.s32 1, %s21
      %s31 = scalar_select %p28, %s30, %s21
      %p32 = scmp.ge.s32.totalorder %s31, 2
      %s33 = scalar_select %p32, 0, %s31
      %s34 = ssub.s32 %s21, %s33
      %s35 = ssub.s32 %s22, %s29
      %s36 = sor.u32 %s34, %s35
      %p37 = scmp.eq.s32.totalorder %s36, 0
      %s39 = sadd.s32 %s38, 1
      %s40 = scalar_select %p37, %s38, %s39
      %p43 = pneg %p37
      %p44 = scmp.eq.s32.totalorder %s14, 1
      %p45 = por %p43, %p44
      %p46 = scmp.ne.s32.totalorder %s38, %s41
      %p47 = scmp.eq.s32.totalorder %s14, 0
      %p48 = por %p46, %p47
      %p49 = scmp.ne.s32.totalorder %s38, %s41
      %p50 = scmp.eq.s32.totalorder %s19, 1
      %p51 = por %p49, %p50
      %p52 = scmp.ne.s32.totalorder %s41, %s42
      %p53 = scmp.eq.s32.totalorder %s19, 0
      %p54 = por %p52, %p53
      %p55 = scmp.ne.s32.totalorder %s41, %s42
      %p56 = scmp.eq.s32.totalorder %s20, 1
      %p57 = por %p55, %p56
      %p59 = scmp.ne.s32.totalorder %s42, %s58
      %p60 = scmp.eq.s32.totalorder %s20, 0
      %p61 = por %p59, %p60
      %s62 = ssub.s32 %s21, %s33
      %s63 = ssub.s32 %s22, %s29
      %s64 = sor.u32 %s62, %s63
      %p65 = scmp.eq.s32.totalorder %s64, 0
      %s67 = sadd.s32 %s66, 1
      %s68 = scalar_select %p65, %s66, %s67
      %p71 = pneg %p65
      %p72 = scmp.eq.s32.totalorder %s14, 1
      %p73 = por %p71, %p72
      %p74 = scmp.ne.s32.totalorder %s66, %s69
      %p75 = scmp.eq.s32.totalorder %s14, 0
      %p76 = por %p74, %p75
      %p77 = scmp.ne.s32.totalorder %s66, %s69
      %p78 = scmp.eq.s32.totalorder %s19, 1
      %p79 = por %p77, %p78
      %p80 = scmp.ne.s32.totalorder %s69, %s70
      %p81 = scmp.eq.s32.totalorder %s19, 0
      %p82 = por %p80, %p81
      %p83 = scmp.ne.s32.totalorder %s69, %s70
      %p84 = scmp.eq.s32.totalorder %s20, 1
      %p85 = por %p83, %p84
      %p87 = scmp.ne.s32.totalorder %s70, %s86
      %p88 = scmp.eq.s32.totalorder %s20, 0
      %p89 = por %p87, %p88
      %s90 = ssub.s32 %s21, %s33
      %p91 = scmp.eq.s32.totalorder %s90, 0
      %s93 = sadd.s32 %s92, 1
      %s94 = scalar_select %p91, %s92, %s93
      %p97 = pneg %p91
      %p98 = scmp.eq.s32.totalorder %s14, 1
      %p99 = por %p97, %p98
      %p100 = scmp.ne.s32.totalorder %s92, %s95
      %p101 = scmp.eq.s32.totalorder %s14, 0
      %p102 = por %p100, %p101
      %p103 = scmp.ne.s32.totalorder %s92, %s95
      %p104 = scmp.eq.s32.totalorder %s19, 1
      %p105 = por %p103, %p104
      %p106 = scmp.ne.s32.totalorder %s95, %s96
      %p107 = scmp.eq.s32.totalorder %s19, 0
      %p108 = por %p106, %p107
      %p109 = scmp.ne.s32.totalorder %s95, %s96
      %p110 = scmp.eq.s32.totalorder %s20, 1
      %p111 = por %p109, %p110
      %p113 = scmp.ne.s32.totalorder %s96, %s112
      %p114 = scmp.eq.s32.totalorder %s20, 0
      %p115 = por %p113, %p114
      %p116 = scmp.le.s32.totalorder 1, %s14
      %p117 = scmp.lt.s32.totalorder %s14, 3
      %p118 = pnand %p116, %p117
      %p119 = pneg %p118
      // Predicated region
      $region9: #{tpu_custom_call.1} parent=5 // pred_check
        _
      $region10: #{tpu_custom_call.1} parent=5 // pred_check_branch
        %121 = sbr.rel (%p118) target = $region12
      $region11: #{tpu_custom_call.1} parent=5 // pred_region
        %s122 = ssub.s32 %s14, 1
      $region12: #{tpu_custom_call.1} parent=5 // pred_fallthru
        _
      %p123 = scmp.lt.s32.totalorder %s14, 2
      // Predicated region
      $region13: #{tpu_custom_call.1} parent=5 // pred_check
        %p124 = pneg %p123
      $region14: #{tpu_custom_call.1} parent=5 // pred_check_branch
        %126 = sbr.rel (%p124) target = $region16
      $region15: #{tpu_custom_call.1} parent=5 // pred_region
        // Predicated region
        $region17: #{tpu_custom_call.1} parent=15 // pred_check
          %p127 = pneg %p48
        $region18: #{tpu_custom_call.1} parent=15 // pred_check_branch
          %129 = sbr.rel (%p127) target = $region20
        $region19: #{tpu_custom_call.1} parent=15 // pred_region
          %s130 = sand.u32 %s38, 1
          %s131 = scalar_lea.sflag [#allocation3], %s130
          %s132 = sand.u32 %s38, 1
          %s133 = smul.addr %s132, 8
          %s134 = scalar_lea.vmem [#allocation2], %s133
          %s135 = smul.u32 2, %s22
          %137 = vsyncadd %s131, 0
          %s138 = smul.addr %s21, 2
          %s139 = sadd.s32 %s135, %s138
          %s140 = smul.addr %s139, 4
          %s141 = scalar_lea.hbm %s0, %s140
          %s143 = sshll.u32 %s141, 4
          %s144 = int_to_ptr.hbm [resolvable:$true] %s143
          %s145 = sshll.u32 %s134, 4
          %s146 = int_to_ptr.vmem [resolvable:$true] %s145
          %148 = dma.hbm_to_vmem [thread:$0]  %s144, 128, %s146, %s131
        $region20: #{tpu_custom_call.1} parent=15 // pred_fallthru
          _
        // Predicated region
        $region21: #{tpu_custom_call.1} parent=15 // pred_check
          %p149 = pneg %p76
        $region22: #{tpu_custom_call.1} parent=15 // pred_check_branch
          %151 = sbr.rel (%p149) target = $region24
        $region23: #{tpu_custom_call.1} parent=15 // pred_region
          %s152 = sand.u32 %s66, 1
          %s153 = scalar_lea.sflag [#allocation5], %s152
          %s154 = sand.u32 %s66, 1
          %s155 = smul.addr %s154, 2
          %s156 = scalar_lea.vmem [#allocation4], %s155
          %s157 = smul.u32 2, %s22
          %159 = vsyncadd %s153, 0
          %s160 = smul.addr %s21, 2
          %s161 = sadd.s32 %s157, %s160
          %s162 = scalar_lea.hbm %s1, %s161
          %s164 = sshll.u32 %s162, 4
          %s165 = int_to_ptr.hbm [resolvable:$true] %s164
          %s166 = sshll.u32 %s156, 4
          %s167 = int_to_ptr.vmem [resolvable:$true] %s166
          %169 = dma.hbm_to_vmem [thread:$0]  %s165, 32, %s167, %s153
        $region24: #{tpu_custom_call.1} parent=15 // pred_fallthru
          _
      $region16: #{tpu_custom_call.1} parent=5 // pred_fallthru
        _
      %p170 = scmp.le.s32.totalorder 1, %s14
      %p171 = scmp.lt.s32.totalorder %s14, 3
      %p172 = pnand %p170, %p171
      %p173 = pneg %p172
      // Predicated region
      $region25: #{tpu_custom_call.1} parent=5 // pred_check
        _
      $region26: #{tpu_custom_call.1} parent=5 // pred_check_branch
        %175 = sbr.rel (%p172) target = $region28
      $region27: #{tpu_custom_call.1} parent=5 // pred_region
        %s176 = ssub.s32 %s14, 1
        %s177 = sand.u32 %s41, 1
        %s178 = scalar_lea.sflag [#allocation3], %s177
        %s179 = sand.u32 %s41, 1
        %s180 = smul.addr %s179, 8
        %s181 = scalar_lea.vmem [#allocation2], %s180
        // Predicated region
        $region29: #{tpu_custom_call.1} parent=27 // pred_check
          %p182 = pneg %p54
        $region30: #{tpu_custom_call.1} parent=27 // pred_check_branch
          %184 = sbr.rel (%p182) target = $region32
        $region31: #{tpu_custom_call.1} parent=27 // pred_region
          %186 = dma.done %s178, 128
        $region32: #{tpu_custom_call.1} parent=27 // pred_fallthru
          _
        %s187 = sand.u32 %s69, 1
        %s188 = scalar_lea.sflag [#allocation5], %s187
        %s189 = sand.u32 %s69, 1
        %s190 = smul.addr %s189, 2
        %s191 = scalar_lea.vmem [#allocation4], %s190
        // Predicated region
        $region33: #{tpu_custom_call.1} parent=27 // pred_check
          %p192 = pneg %p82
        $region34: #{tpu_custom_call.1} parent=27 // pred_check_branch
          %194 = sbr.rel (%p192) target = $region36
        $region35: #{tpu_custom_call.1} parent=27 // pred_region
          %196 = dma.done %s188, 32
        $region36: #{tpu_custom_call.1} parent=27 // pred_fallthru
          _
        %s197 = sand.u32 %s41, 1
        %s198 = scalar_lea.sflag [#allocation3], %s197
        %s199 = sand.u32 %s41, 1
        %s200 = smul.addr %s199, 8
        %s201 = scalar_lea.vmem [#allocation2], %s200
        %p202 = pneg %p54
        %p203 = pneg %p51
        %s204 = sand.u32 %s69, 1
        %s205 = scalar_lea.sflag [#allocation5], %s204
        %s206 = sand.u32 %s69, 1
        %s207 = smul.addr %s206, 2
        %s208 = scalar_lea.vmem [#allocation4], %s207
        %p209 = pneg %p82
        %p210 = pneg %p79
        %p211 = pneg %p108
        %p212 = pneg %p105
        %p213 = scmp.lt.s32.totalorder %s23, 1
        %s214 = scalar_select %p213, %s23, 1
        %s215 = scalar_lea.vmem %s2, %s214
        %s216 = smul.u32 2, %s24
        %s217 = smul.u32 2, %s24
        %p218 = scmp.lt.s32.totalorder %s23, 1
        %s219 = scalar_select %p218, %s23, 1
        %s220 = scalar_lea.vmem %s2, %s219
        %p221 = scmp.eq.s32.totalorder %s24, 0
        // Predicated region
        $region37: #{tpu_custom_call.1} parent=27 // pred_check
          %p222 = pneg %p221
        $region38: #{tpu_custom_call.1} parent=27 // pred_check_branch
          %224 = sbr.rel (%p222) target = $region40
        $region39: #{tpu_custom_call.1} parent=27 // pred_region
          %vm225 = vcmask 0
          %226 = vst.msk [vmem:[%s220] sm:$0x1] %vm225, 0.0
        $region40: #{tpu_custom_call.1} parent=27 // pred_fallthru
          _
        %v227 = vld [vmem:[%s181] sm:$0xff]
        %v228 = vld [vmem:[%s191] sm:$0x3]
        %230 = vst [vmem:[#allocation1] ss:$2 sm:$0xff] %v227
        %v231 = vld.sshfl [vmem:[#allocation1] sm:$0xff pattern:$0x75316420]
        %v232 = vld.sshfl [vmem:[#allocation1 + $0x8] sm:$0xff pattern:$0x75316420]
        %vm235 = vcmask 1043456
        %v236 = vsel %vm235, %v231, -inf
        %v237 = vrot.slane %v236, 4
        %v238 = vmax.f32 %v236, %v237
        %v239 = vrot.slane %v238, 2
        %v240 = vmax.f32 %v238, %v239
        %v241 = vrot.slane %v240, 1
        %v242 = vmax.f32 %v240, %v241
        %v243 = vsel %vm235, %v232, -inf
        %v244 = vrot.slane %v243, 4
        %v245 = vmax.f32 %v243, %v244
        %v246 = vrot.slane %v245, 2
        %v247 = vmax.f32 %v245, %v246
        %v248 = vrot.slane %v247, 1
        %v249 = vmax.f32 %v247, %v248
        %v252 = vrot.slane %v249, 4
        %v253 = vsel %vm235, %v242, %v252
        %v255 = vsub.f32 %v227, %v253
        %v256 = vmul.f32 %v255, 1.442695
        %v257 = vpow.pop %v256
        %259 = vst [vmem:[#allocation1] ss:$2 sm:$0xff] %v257
        %v260 = vld.sshfl [vmem:[#allocation1] sm:$0xff pattern:$0x75316420]
        %v261 = vld.sshfl [vmem:[#allocation1 + $0x8] sm:$0xff pattern:$0x75316420]
        %v264 = vsel %vm235, %v260, 0.0
        %v265 = vrot.slane %v264, 4
        %v266 = vadd.f32 %v264, %v265
        %v267 = vrot.slane %v266, 2
        %v268 = vadd.f32 %v266, %v267
        %v269 = vrot.slane %v268, 1
        %v270 = vadd.f32 %v268, %v269
        %v271 = vsel %vm235, %v261, 0.0
        %v272 = vrot.slane %v271, 4
        %v273 = vadd.f32 %v271, %v272
        %v274 = vrot.slane %v273, 2
        %v275 = vadd.f32 %v273, %v274
        %v276 = vrot.slane %v275, 1
        %v277 = vadd.f32 %v275, %v276
        %v278 = vlaneseq
        %v279 = vshrl.u32 %v278, 7
        %v280 = vperm.slane %v228, 0
        %v281 = vperm.slane %v228, 1
        %vm282 = vcmp.eq.s32.totalorder %v279, %v280
        %vm283 = vcmp.eq.s32.totalorder %v279, %v281
        %284 = vst [vmem:[#allocation1] ss:$2 sm:$0xff] %v257
        %v285 = vld.sshfl [vmem:[#allocation1] sm:$0xff pattern:$0x75316420]
        %v286 = vld.sshfl [vmem:[#allocation1 + $0x8] sm:$0xff pattern:$0x75316420]
        %v289 = vsel %vm282, %v285, 0.0
        %v290 = vsel %vm283, %v286, 0.0
        %v291 = vsel %vm235, %v289, 0.0
        %v292 = vrot.slane %v291, 4
        %v293 = vadd.f32 %v291, %v292
        %v294 = vrot.slane %v293, 2
        %v295 = vadd.f32 %v293, %v294
        %v296 = vrot.slane %v295, 1
        %v297 = vadd.f32 %v295, %v296
        %v298 = vsel %vm235, %v290, 0.0
        %v299 = vrot.slane %v298, 4
        %v300 = vadd.f32 %v298, %v299
        %v301 = vrot.slane %v300, 2
        %v302 = vadd.f32 %v300, %v301
        %v303 = vrot.slane %v302, 1
        %v304 = vadd.f32 %v302, %v303
        %v305 = vrcp.pop %v270
        %v306 = vmul.f32 %v270, %v305
        %v307 = vsub.f32 1.0, %v306
        %v308 = vmul.f32 %v305, %v307
        %v309 = vadd.f32 %v305, %v308
        %vm310 = vweird.f32 %v270
        %vm311 = vweird.f32 %v305
        %vm312 = vmor %vm310, %vm311
        %v313 = vsel %vm312, %v305, %v309
        %v314 = vand.u32 2147483647, %v270
        %vm315 = vcmp.eq.f32.partialorder %v314, 8.507059e+37
        %v316 = vand.u32 %v270, 2147483648
        %v317 = vor.u32 1.1754944e-38, %v316
        %v318 = vsel %vm315, %v317, %v313
        %v319 = vmul.f32 %v297, %v318
        %v320 = vrcp.pop %v277
        %v321 = vmul.f32 %v277, %v320
        %v322 = vsub.f32 1.0, %v321
        %v323 = vmul.f32 %v320, %v322
        %v324 = vadd.f32 %v320, %v323
        %vm325 = vweird.f32 %v277
        %vm326 = vweird.f32 %v320
        %vm327 = vmor %vm325, %vm326
        %v328 = vsel %vm327, %v320, %v324
        %v329 = vand.u32 2147483647, %v277
        %vm330 = vcmp.eq.f32.partialorder %v329, 8.507059e+37
        %v331 = vand.u32 %v277, 2147483648
        %v332 = vor.u32 1.1754944e-38, %v331
        %v333 = vsel %vm330, %v332, %v328
        %v334 = vmul.f32 %v304, %v333
        %v335 = vadd.f32 %v319, 0.0001
        %v336 = vadd.f32 %v334, 0.0001
        %v337 = vlog2.pop %v335
        %v338 = vmul.f32 %v337, 0.6931472
        %v339 = vlog2.pop %v336
        %v340 = vmul.f32 %v339, 0.6931472
        %v341 = vsub.f32 1.0, %v335
        %v342 = vsub.f32 1.0, %v336
        %v343 = vmul.f32 %v341, %v341
        %v344 = vmul.f32 %v342, %v342
        %v345 = vmul.f32 %v343, %v338
        %v346 = vmul.f32 %v344, %v340
        %v347 = vsub.f32 0.0, %v345
        %v348 = vsub.f32 0.0, %v346
        %v349 = vlaneseq
        %v350 = vand.u32 %v349, 127
        %v351 = vadd.s32 %v350, 128
        %s352 = smul.u32 %s24, 256
        %v353 = vstv %s352
        %v354 = vadd.s32 %v353, %v350
        %v355 = vadd.s32 %v353, %v351
        %vm356 = vcmp.lt.s32.totalorder %v354, 256
        %vm357 = vcmp.lt.s32.totalorder %v355, 256
        %v358 = vsel %vm356, %v347, 0.0
        %v359 = vsel %vm357, %v348, 0.0
        %v360 = vld [vmem:[%s220] sm:$0x1]
        %vm361 = vcmask 1040384
        %v362 = vsel %vm361, %v358, 0.0
        %v363 = vsel %vm361, %v359, 0.0
        %v364 = vadd.f32 %v362, %v363
        %365 = vadd.xlane.f32.xlu0 %v364
        %v366 = vpop.xlane.xlu0 %365
        %v367 = vrot.slane %v366, 4
        %v368 = vadd.f32 %v366, %v367
        %v369 = vrot.slane %v368, 2
        %v370 = vadd.f32 %v368, %v369
        %v371 = vrot.slane %v370, 1
        %v372 = vadd.f32 %v370, %v371
        %s373 = vtos %v372
        %v374 = vstv %s373
        %v375 = vadd.f32 %v360, %v374
        %vm376 = vcmask 0
        %377 = vst.msk [vmem:[%s220] sm:$0x1] %vm376, %v375
        %p378 = scmp.lt.s32.totalorder %s23, 1
        %s379 = scalar_select %p378, %s23, 1
        %s380 = scalar_lea.vmem %s2, %s379
        // Predicated region
        $region41: #{tpu_custom_call.1} parent=27 // pred_check
          %p381 = pneg %p105
        $region42: #{tpu_custom_call.1} parent=27 // pred_check_branch
          %383 = sbr.rel (%p381) target = $region44
        $region43: #{tpu_custom_call.1} parent=27 // pred_region
          _
        $region44: #{tpu_custom_call.1} parent=27 // pred_fallthru
          _
      $region28: #{tpu_custom_call.1} parent=5 // pred_fallthru
        _
      %p384 = scmp.le.s32.totalorder 2, %s14
      // Predicated region
      $region45: #{tpu_custom_call.1} parent=5 // pred_check
        %p385 = pneg %p384
      $region46: #{tpu_custom_call.1} parent=5 // pred_check_branch
        %387 = sbr.rel (%p385) target = $region48
      $region47: #{tpu_custom_call.1} parent=5 // pred_region
        %s388 = ssub.s32 %s14, 2
        // Predicated region
        $region49: #{tpu_custom_call.1} parent=47 // pred_check
          %p389 = pneg %p111
        $region50: #{tpu_custom_call.1} parent=47 // pred_check_branch
          %391 = sbr.rel (%p389) target = $region52
        $region51: #{tpu_custom_call.1} parent=47 // pred_region
          %p392 = scmp.lt.s32.totalorder %s25, 1
          %s393 = scalar_select %p392, %s25, 1
          %s394 = scalar_lea.vmem %s2, %s393
        $region52: #{tpu_custom_call.1} parent=47 // pred_fallthru
          _
      $region48: #{tpu_custom_call.1} parent=5 // pred_fallthru
        _
    $region6: #{tpu_custom_call.1} parent=1 // loop_footer
      %s18 = sadd.s32 1, %s14
    $region7: #{tpu_custom_call.1} parent=1 // loop_footer_branch
      %13 = sbr.rel target = $region3
    $region8: #{tpu_custom_call.1} parent=1 // loop_exit
      _
    %395 = vsyncpa [#allocation3], 1
    %s396 = scalar_lea.sflag [#allocation3], 1
    %397 = vsyncpa %s396, 1
    %398 = vsyncpa [#allocation5], 1
    %s399 = scalar_lea.sflag [#allocation5], 1
    %400 = vsyncpa %s399, 1

</llo_original>
